<compile_context>
chip_gen: v7x
topology: tpu7x:2x2x1
jax: 0.10.0
libtpu: 0.0.40
codegen_flags: <defaults>
</compile_context>

<pallas_src>
import math
from functools import partial

import jax
import jax.numpy as jnp
from jax import lax
from jax.experimental import pallas as pl
from jax.experimental.pallas import tpu as pltpu

NEG_INF = -1e30  # finite large-negative mask (avoids NaN from inf - inf in tiled softmax)


def _pick_tile(s, candidates=(512, 256, 128)):
    # v6e likes 512-ish tiles, v5e 128-multiples, v7x ~256 (64 MiB VMEM).
    # Fall back to the full (small) sequence when it doesn't tile.
    for c in candidates:
        if s % c == 0:
            return c
    return s


# --------------------------- fused QKV projection ---------------------------

def _qkv_proj_kernel(q_ref, k_ref, v_ref, wq_ref, wk_ref, wv_ref,
                     qp_ref, kp_ref, vp_ref):
    # Full-width (tm, D) @ (D, D) matmuls: all heads fused so the MXU sees an
    # N = D output instead of H tiny N = Dh matmuls.
    q = q_ref[0].astype(jnp.bfloat16)
    k = k_ref[0].astype(jnp.bfloat16)
    v = v_ref[0].astype(jnp.bfloat16)
    qp_ref[0] = jnp.dot(q, wq_ref[...], preferred_element_type=jnp.float32).astype(qp_ref.dtype)
    kp_ref[0] = jnp.dot(k, wk_ref[...], preferred_element_type=jnp.float32).astype(kp_ref.dtype)
    vp_ref[0] = jnp.dot(v, wv_ref[...], preferred_element_type=jnp.float32).astype(vp_ref.dtype)


def _qkv_project(q, k, v, wq_f, wk_f, wv_f, tm):
    B, S, D = q.shape
    n_m = S // tm
    grid_spec = pltpu.PrefetchScalarGridSpec(
        num_scalar_prefetch=0,
        grid=(B, n_m),
        in_specs=[
            pl.BlockSpec((1, tm, D), lambda b, i: (b, i, 0)),
            pl.BlockSpec((1, tm, D), lambda b, i: (b, i, 0)),
            pl.BlockSpec((1, tm, D), lambda b, i: (b, i, 0)),
            pl.BlockSpec((D, D), lambda b, i: (0, 0)),
            pl.BlockSpec((D, D), lambda b, i: (0, 0)),
            pl.BlockSpec((D, D), lambda b, i: (0, 0)),
        ],
        out_specs=[
            pl.BlockSpec((1, tm, D), lambda b, i: (b, i, 0)),
            pl.BlockSpec((1, tm, D), lambda b, i: (b, i, 0)),
            pl.BlockSpec((1, tm, D), lambda b, i: (b, i, 0)),
        ],
    )
    out_shape = (jax.ShapeDtypeStruct((B, S, D), jnp.bfloat16),
                 jax.ShapeDtypeStruct((B, S, D), jnp.bfloat16),
                 jax.ShapeDtypeStruct((B, S, D), jnp.bfloat16))
    return pl.pallas_call(
        _qkv_proj_kernel,
        out_shape=out_shape,
        grid_spec=grid_spec,
        compiler_params=pltpu.CompilerParams(
            dimension_semantics=("parallel", "parallel")),
    )(q, k, v, wq_f, wk_f, wv_f)


# --------------------------- flash attention + W_o ---------------------------

def _flash_attn_kernel(q_ref, k_ref, v_ref, wo_ref, o_ref,
                       acc_ref, m_ref, l_ref, *, n_heads, d_head, tq, tk):
    qi = pl.program_id(1)
    ki = pl.program_id(2)
    n_kv = pl.num_programs(2)

    @pl.when(ki == 0)
    def _init():
        m_ref[...] = jnp.full_like(m_ref, NEG_INF)
        l_ref[...] = jnp.zeros_like(l_ref)
        acc_ref[...] = jnp.zeros_like(acc_ref)

    q_start = qi * tq
    k_start = ki * tk

    # Skip kv tiles entirely above the causal diagonal (DMA also suppressed via
    # the clamped index_map in the wrapper).
    @pl.when(k_start <= q_start + tq - 1)
    def _compute():
        q = q_ref[0]  # (tq, D) bf16, already scaled by 1/sqrt(d_embed)
        k = k_ref[0]  # (tk, D) bf16
        v = v_ref[0]  # (tk, D) bf16

        row = q_start + lax.broadcasted_iota(jnp.int32, (tq, tk), 0)
        col = k_start + lax.broadcasted_iota(jnp.int32, (tq, tk), 1)
        causal = col <= row

        for h in range(n_heads):  # static unroll; results go straight to scratch
            sl = slice(h * d_head, (h + 1) * d_head)
            # Scores: contract head dims of Q and K without materializing K.T.
            s = lax.dot_general(q[:, sl], k[:, sl],
                                dimension_numbers=(((1,), (1,)), ((), ())),
                                preferred_element_type=jnp.float32)  # (tq, tk)
            s = jnp.where(causal, s, NEG_INF)

            m_prev = m_ref[:, h:h + 1]                                   # (tq, 1)
            m_new = jnp.maximum(m_prev, jnp.max(s, axis=-1, keepdims=True))
            alpha = jnp.exp(m_prev - m_new)                              # (tq, 1)
            p = jnp.exp(s - m_new)                                       # (tq, tk) f32
            # TODO(synk): attn_dropout (p=0.1) omitted — eval-mode identity.

            l_ref[:, h:h + 1] = alpha * l_ref[:, h:h + 1] + jnp.sum(p, axis=-1, keepdims=True)
            acc_ref[:, sl] = alpha * acc_ref[:, sl] + jnp.dot(
                p.astype(v.dtype), v[:, sl], preferred_element_type=jnp.float32)
            m_ref[:, h:h + 1] = m_new

    @pl.when(ki == n_kv - 1)
    def _finalize():
        inv_l = pl.reciprocal(l_ref[...], approx=True)                   # (tq, H)
        for h in range(n_heads):
            sl = slice(h * d_head, (h + 1) * d_head)
            acc_ref[:, sl] = acc_ref[:, sl] * inv_l[:, h:h + 1]
        # Output projection: attn_out @ W_o^T (W_o pre-transposed in wrapper,
        # so no in-kernel transpose).
        # TODO(synk): out_dropout (p=0.1) omitted — eval-mode identity.
        o_ref[0] = jnp.dot(acc_ref[...].astype(jnp.bfloat16), wo_ref[...],
                           preferred_element_type=jnp.float32).astype(o_ref.dtype)


def attention_forward(q, k, v, W_q, W_k, W_v, W_o):
    B, S, D = q.shape
    H, _, Dh = W_q.shape
    scale = 1.0 / math.sqrt(D)  # module scales by sqrt(d_embed), not sqrt(d_head)

    # Fuse per-head projection weights into full-width (D, D) matrices with
    # head-major output columns; fold the score scale into W_q once, here.
    wq_f = (jnp.transpose(W_q, (1, 0, 2)).reshape(D, H * Dh) * scale).astype(jnp.bfloat16)
    wk_f = jnp.transpose(W_k, (1, 0, 2)).reshape(D, H * Dh).astype(jnp.bfloat16)
    wv_f = jnp.transpose(W_v, (1, 0, 2)).reshape(D, H * Dh).astype(jnp.bfloat16)
    wo_t = jnp.transpose(W_o).astype(jnp.bfloat16)  # (D_in, D_out): kernel does x @ wo_t

    tm = _pick_tile(S)
    qp, kp, vp = _qkv_project(q, k, v, wq_f, wk_f, wv_f, tm)

    tq = _pick_tile(S)
    tk = _pick_tile(S)
    n_q = S // tq
    n_kv = S // tk

    def kv_cap(qi):
        # last kv tile that intersects the causal region of q tile `qi`
        return ((qi + 1) * tq - 1) // tk

    kernel = partial(_flash_attn_kernel, n_heads=H, d_head=Dh, tq=tq, tk=tk)

    grid_spec = pltpu.PrefetchScalarGridSpec(
        num_scalar_prefetch=0,
        grid=(B, n_q, n_kv),
        in_specs=[
            pl.BlockSpec((1, tq, D), lambda b, qi, ki: (b, qi, 0)),
            # Clamp kv block index: fully-masked tiles re-use the previous
            # block -> no extra HBM->VMEM DMA for skipped tiles.
            pl.BlockSpec((1, tk, D),
                         lambda b, qi, ki: (b, jnp.minimum(ki, kv_cap(qi)), 0)),
            pl.BlockSpec((1, tk, D),
                         lambda b, qi, ki: (b, jnp.minimum(ki, kv_cap(qi)), 0)),
            pl.BlockSpec((D, D), lambda b, qi, ki: (0, 0)),  # W_o^T, resident
        ],
        out_specs=pl.BlockSpec((1, tq, D), lambda b, qi, ki: (b, qi, 0)),
        scratch_shapes=[
            pltpu.VMEM((tq, D), jnp.float32),  # acc (head-major columns)
            pltpu.VMEM((tq, H), jnp.float32),  # running max per head
            pltpu.VMEM((tq, H), jnp.float32),  # running sum per head
        ],
    )

    return pl.pallas_call(
        kernel,
        out_shape=jax.ShapeDtypeStruct((B, S, D), q.dtype),
        grid_spec=grid_spec,
        compiler_params=pltpu.CompilerParams(
            dimension_semantics=("parallel", "parallel", "arbitrary")),
    )(qp, kp, vp, wo_t)


def attention_reference(q, k, v, W_q, W_k, W_v, W_o):
    """Pure-JAX f32 replica of the PyTorch forward (eval mode, dropout = identity)."""
    B, S, D = q.shape
    Q = jnp.einsum("bsd,hde->bhse", q, W_q)
    K = jnp.einsum("bsd,hde->bhse", k, W_k)
    V = jnp.einsum("bsd,hde->bhse", v, W_v)
    s = jnp.einsum("bhse,bhte->bhst", Q, K) / math.sqrt(D)
    mask = jnp.tril(jnp.ones((S, S), dtype=bool))
    s = jnp.where(mask[None, None], s, -jnp.inf)
    p = jax.nn.softmax(s, axis=-1)
    o = jnp.einsum("bhst,bhte->bhse", p, V)
    o = jnp.transpose(o, (0, 2, 1, 3)).reshape(B, S, D)
    return o @ W_o.T


if __name__ == "__main__":
    B, S, D, H = 2, 8, 32, 4
    Dh = D // H

    key = jax.random.PRNGKey(0)
    kq, kk, kv, kwq, kwk, kwv, kwo = jax.random.split(key, 7)
    q = jax.random.normal(kq, (B, S, D), jnp.float32)
    k = jax.random.normal(kk, (B, S, D), jnp.float32)
    v = jax.random.normal(kv, (B, S, D), jnp.float32)

    # NOTE: the PyTorch __init__ uses torch.zeros for W_q/W_k/W_v (trivially-zero
    # output); use small deterministic random values instead.
    W_q = 0.1 * jax.random.normal(kwq, (H, D, Dh), jnp.float32)
    W_k = 0.1 * jax.random.normal(kwk, (H, D, Dh), jnp.float32)
    W_v = 0.1 * jax.random.normal(kwv, (H, D, Dh), jnp.float32)
    W_o = 0.1 * jax.random.normal(kwo, (D, D), jnp.float32)

    out = attention_forward(q, k, v, W_q, W_k, W_v, W_o)
    out = jax.block_until_ready(out)

    ref = attention_reference(q, k, v, W_q, W_k, W_v, W_o)
    assert out.shape == (B, S, D)
    # bf16 MXU operands with f32 accumulation -> compare at bf16-level tolerance.
    max_err = float(jnp.max(jnp.abs(out - ref)))
    assert jnp.allclose(out, ref, atol=3e-2, rtol=3e-2), f"max abs err {max_err}"
    print("KERNEL_OK")
</pallas_src>

<mosaic_0001>
module attributes {stable_mosaic.version = 11 : i64} {
  func.func @_qkv_proj_kernel(%arg0: i32, %arg1: i32, %arg2: memref<1x8x32xf32, #tpu.memory_space<vmem>>, %arg3: memref<1x8x32xf32, #tpu.memory_space<vmem>>, %arg4: memref<1x8x32xf32, #tpu.memory_space<vmem>>, %arg5: memref<32x32xbf16, #tpu.memory_space<vmem>>, %arg6: memref<32x32xbf16, #tpu.memory_space<vmem>>, %arg7: memref<32x32xbf16, #tpu.memory_space<vmem>>, %arg8: memref<1x8x32xbf16, #tpu.memory_space<vmem>>, %arg9: memref<1x8x32xbf16, #tpu.memory_space<vmem>>, %arg10: memref<1x8x32xbf16, #tpu.memory_space<vmem>>) attributes {dimension_semantics = [#tpu.dimension_semantics<parallel>, #tpu.dimension_semantics<parallel>], iteration_bounds = array<i64: 2, 1>, scalar_prefetch = 0 : i64, scratch_operands = 0 : i64, tpu.core_type = #tpu.core_type<tc>, window_params = [{transform_indices = @transform_0, window_bounds = array<i64: 1, 8, 32>}, {transform_indices = @transform_1, window_bounds = array<i64: 1, 8, 32>}, {transform_indices = @transform_2, window_bounds = array<i64: 1, 8, 32>}, {pipeline_mode = #tpu.pipeline_mode<synchronous>, transform_indices = @transform_3, window_bounds = array<i64: 32, 32>}, {pipeline_mode = #tpu.pipeline_mode<synchronous>, transform_indices = @transform_4, window_bounds = array<i64: 32, 32>}, {pipeline_mode = #tpu.pipeline_mode<synchronous>, transform_indices = @transform_5, window_bounds = array<i64: 32, 32>}, {transform_indices = @transform_6, window_bounds = array<i64: 1, 8, 32>}, {transform_indices = @transform_7, window_bounds = array<i64: 1, 8, 32>}, {transform_indices = @transform_8, window_bounds = array<i64: 1, 8, 32>}]} {
    %c0 = arith.constant 0 : index
    %c0_0 = arith.constant 0 : index
    %c0_1 = arith.constant 0 : index
    %0 = vector.load %arg2[%c0, %c0_0, %c0_1] : memref<1x8x32xf32, #tpu.memory_space<vmem>>, vector<1x8x32xf32>
    %1 = vector.shape_cast %0 : vector<1x8x32xf32> to vector<8x32xf32>
    %2 = arith.truncf %1 : vector<8x32xf32> to vector<8x32xbf16>
    %c0_2 = arith.constant 0 : index
    %c0_3 = arith.constant 0 : index
    %c0_4 = arith.constant 0 : index
    %3 = vector.load %arg3[%c0_2, %c0_3, %c0_4] : memref<1x8x32xf32, #tpu.memory_space<vmem>>, vector<1x8x32xf32>
    %4 = vector.shape_cast %3 : vector<1x8x32xf32> to vector<8x32xf32>
    %5 = arith.truncf %4 : vector<8x32xf32> to vector<8x32xbf16>
    %c0_5 = arith.constant 0 : index
    %c0_6 = arith.constant 0 : index
    %c0_7 = arith.constant 0 : index
    %6 = vector.load %arg4[%c0_5, %c0_6, %c0_7] : memref<1x8x32xf32, #tpu.memory_space<vmem>>, vector<1x8x32xf32>
    %7 = vector.shape_cast %6 : vector<1x8x32xf32> to vector<8x32xf32>
    %8 = arith.truncf %7 : vector<8x32xf32> to vector<8x32xbf16>
    %c0_8 = arith.constant 0 : index
    %c0_9 = arith.constant 0 : index
    %9 = vector.load %arg5[%c0_8, %c0_9] : memref<32x32xbf16, #tpu.memory_space<vmem>>, vector<32x32xbf16>
    %cst = arith.constant dense<0.000000e+00> : vector<8x32xf32>
    %10 = tpu.matmul %2, %9, %cst {dimension_numbers = #tpu.dot_dimension_numbers<[1], [0], [0], [1], [0, 0, 1, 1], [], []>} : vector<8x32xbf16>, vector<32x32xbf16>, vector<8x32xf32> -> vector<8x32xf32>
    %11 = arith.truncf %10 : vector<8x32xf32> to vector<8x32xbf16>
    %c0_10 = arith.constant 0 : index
    %c0_11 = arith.constant 0 : index
    %c0_12 = arith.constant 0 : index
    %12 = vector.load %arg8[%c0_10, %c0_11, %c0_12] : memref<1x8x32xbf16, #tpu.memory_space<vmem>>, vector<1x8x32xbf16>
    %13 = vector.shape_cast %12 : vector<1x8x32xbf16> to vector<8x32xbf16>
    %14 = vector.shape_cast %11 : vector<8x32xbf16> to vector<1x8x32xbf16>
    tpu.vector_store %arg8[%c0_10, %c0_11, %c0_12], %14 {strides = array<i32>} : memref<1x8x32xbf16, #tpu.memory_space<vmem>>, vector<1x8x32xbf16>,
    %c0_13 = arith.constant 0 : index
    %c0_14 = arith.constant 0 : index
    %15 = vector.load %arg6[%c0_13, %c0_14] : memref<32x32xbf16, #tpu.memory_space<vmem>>, vector<32x32xbf16>
    %cst_15 = arith.constant dense<0.000000e+00> : vector<8x32xf32>
    %16 = tpu.matmul %5, %15, %cst_15 {dimension_numbers = #tpu.dot_dimension_numbers<[1], [0], [0], [1], [0, 0, 1, 1], [], []>} : vector<8x32xbf16>, vector<32x32xbf16>, vector<8x32xf32> -> vector<8x32xf32>
    %17 = arith.truncf %16 : vector<8x32xf32> to vector<8x32xbf16>
    %c0_16 = arith.constant 0 : index
    %c0_17 = arith.constant 0 : index
    %c0_18 = arith.constant 0 : index
    %18 = vector.load %arg9[%c0_16, %c0_17, %c0_18] : memref<1x8x32xbf16, #tpu.memory_space<vmem>>, vector<1x8x32xbf16>
    %19 = vector.shape_cast %18 : vector<1x8x32xbf16> to vector<8x32xbf16>
    %20 = vector.shape_cast %17 : vector<8x32xbf16> to vector<1x8x32xbf16>
    tpu.vector_store %arg9[%c0_16, %c0_17, %c0_18], %20 {strides = array<i32>} : memref<1x8x32xbf16, #tpu.memory_space<vmem>>, vector<1x8x32xbf16>,
    %c0_19 = arith.constant 0 : index
    %c0_20 = arith.constant 0 : index
    %21 = vector.load %arg7[%c0_19, %c0_20] : memref<32x32xbf16, #tpu.memory_space<vmem>>, vector<32x32xbf16>
    %cst_21 = arith.constant dense<0.000000e+00> : vector<8x32xf32>
    %22 = tpu.matmul %8, %21, %cst_21 {dimension_numbers = #tpu.dot_dimension_numbers<[1], [0], [0], [1], [0, 0, 1, 1], [], []>} : vector<8x32xbf16>, vector<32x32xbf16>, vector<8x32xf32> -> vector<8x32xf32>
    %23 = arith.truncf %22 : vector<8x32xf32> to vector<8x32xbf16>
    %c0_22 = arith.constant 0 : index
    %c0_23 = arith.constant 0 : index
    %c0_24 = arith.constant 0 : index
    %24 = vector.load %arg10[%c0_22, %c0_23, %c0_24] : memref<1x8x32xbf16, #tpu.memory_space<vmem>>, vector<1x8x32xbf16>
    %25 = vector.shape_cast %24 : vector<1x8x32xbf16> to vector<8x32xbf16>
    %26 = vector.shape_cast %23 : vector<8x32xbf16> to vector<1x8x32xbf16>
    tpu.vector_store %arg10[%c0_22, %c0_23, %c0_24], %26 {strides = array<i32>} : memref<1x8x32xbf16, #tpu.memory_space<vmem>>, vector<1x8x32xbf16>,
    return
  }
  func.func @transform_0(%arg0: i32, %arg1: i32) -> (i32, i32, i32) {
    %c0_i32 = arith.constant 0 : i32
    %c0_i32_0 = arith.constant 0 : i32
    return %arg0, %arg1, %c0_i32 : i32, i32, i32
  }
  func.func @transform_1(%arg0: i32, %arg1: i32) -> (i32, i32, i32) {
    %c0_i32 = arith.constant 0 : i32
    %c0_i32_0 = arith.constant 0 : i32
    return %arg0, %arg1, %c0_i32 : i32, i32, i32
  }
  func.func @transform_2(%arg0: i32, %arg1: i32) -> (i32, i32, i32) {
    %c0_i32 = arith.constant 0 : i32
    %c0_i32_0 = arith.constant 0 : i32
    return %arg0, %arg1, %c0_i32 : i32, i32, i32
  }
  func.func @transform_3(%arg0: i32, %arg1: i32) -> (i32, i32) {
    %c0_i32 = arith.constant 0 : i32
    %c0_i32_0 = arith.constant 0 : i32
    %c0_i32_1 = arith.constant 0 : i32
    return %c0_i32, %c0_i32_0 : i32, i32
  }
  func.func @transform_4(%arg0: i32, %arg1: i32) -> (i32, i32) {
    %c0_i32 = arith.constant 0 : i32
    %c0_i32_0 = arith.constant 0 : i32
    %c0_i32_1 = arith.constant 0 : i32
    return %c0_i32, %c0_i32_0 : i32, i32
  }
  func.func @transform_5(%arg0: i32, %arg1: i32) -> (i32, i32) {
    %c0_i32 = arith.constant 0 : i32
    %c0_i32_0 = arith.constant 0 : i32
    %c0_i32_1 = arith.constant 0 : i32
    return %c0_i32, %c0_i32_0 : i32, i32
  }
  func.func @transform_6(%arg0: i32, %arg1: i32) -> (i32, i32, i32) {
    %c0_i32 = arith.constant 0 : i32
    %c0_i32_0 = arith.constant 0 : i32
    return %arg0, %arg1, %c0_i32 : i32, i32, i32
  }
  func.func @transform_7(%arg0: i32, %arg1: i32) -> (i32, i32, i32) {
    %c0_i32 = arith.constant 0 : i32
    %c0_i32_0 = arith.constant 0 : i32
    return %arg0, %arg1, %c0_i32 : i32, i32, i32
  }
  func.func @transform_8(%arg0: i32, %arg1: i32) -> (i32, i32, i32) {
    %c0_i32 = arith.constant 0 : i32
    %c0_i32_0 = arith.constant 0 : i32
    return %arg0, %arg1, %c0_i32 : i32, i32, i32
  }
}

</mosaic_0001>

<llo_original>
// kernel: tpu_custom_call.1
$region0: #{tpu_custom_call.1}
  #allocation0 [shape = 'u32[]', space=smem, size = 0x4, offset = 0x4, fixed_abs, tag = 'smem constant byte address 0x4 - core index']
  #allocation1 [shape = 'u32[144,128]{1,0:T(1,128)}', space=vmem, size = 0x12000, scoped, tag = 'internal scratch']
  %s0 = inlined_call_operand.hbm [shape: f32[2,8,32], index: 0, kind: input, shape index: {}]
  %s1 = inlined_call_operand.hbm [shape: f32[2,8,32], index: 1, kind: input, shape index: {}]
  %s2 = inlined_call_operand.hbm [shape: f32[2,8,32], index: 2, kind: input, shape index: {}]
  %s3 = inlined_call_operand.hbm [shape: bf16[32,32], index: 3, kind: input, shape index: {}]
  %s4 = inlined_call_operand.hbm [shape: bf16[32,32], index: 4, kind: input, shape index: {}]
  %s5 = inlined_call_operand.vmem [shape: bf16[32,32], index: 5, kind: input, shape index: {}]
  %s6 = inlined_call_operand.hbm [shape: bf16[2,8,32], index: 6, kind: output, shape index: {0}]
  %s7 = inlined_call_operand.hbm [shape: bf16[2,8,32], index: 7, kind: output, shape index: {1}]
  %s8 = inlined_call_operand.hbm [shape: bf16[2,8,32], index: 8, kind: output, shape index: {2}]
  %9 = xla_tuple %s6, %s7, %s8
  %s10 = sld [smem:[#allocation0]]
  $region93: #{tpu_custom_call.1} parent=0
    _
  %s12 = ssub.s32 1, %s10
  %s13 = scalar_select 0, %s12, %s10
  $region1: #{tpu_custom_call.1} parent=0
    #allocation2 [shape = 'u8[8192]{0}', space=vmem, size = 0x2000, scoped, tag = 'input window, operand 0']
    #allocation3 [shape = 's32[2]{0}', space=sflag, size = 0x8, scoped, tag = 'scoped memory for tpu_custom_call.1']
    #allocation4 [shape = 's32[2]{0}', space=sflag, size = 0x8, scoped, tag = 'scoped memory for tpu_custom_call.1']
    #allocation5 [shape = 'u8[8192]{0}', space=vmem, size = 0x2000, scoped, tag = 'input window, operand 1']
    #allocation6 [shape = 's32[2]{0}', space=sflag, size = 0x8, scoped, tag = 'scoped memory for tpu_custom_call.1']
    #allocation7 [shape = 'u8[8192]{0}', space=vmem, size = 0x2000, scoped, tag = 'input window, operand 2']
    #allocation8 [shape = 'u8[8192]{0}', space=vmem, size = 0x2000, scoped, tag = 'input window, operand 3, single buffered']
    #allocation9 [shape = 's32[1]{0}', space=sflag, size = 0x4, scoped, tag = 'scoped memory for tpu_custom_call.1']
    #allocation10 [shape = 'u8[8192]{0}', space=vmem, size = 0x2000, scoped, tag = 'input window, operand 4, single buffered']
    #allocation11 [shape = 'u8[4096]{0}', space=vmem, size = 0x1000, scoped, tag = 'output window, operand 0']
    #allocation12 [shape = 'u8[4096]{0}', space=vmem, size = 0x1000, scoped, tag = 'output window, operand 1']
    #allocation13 [shape = 's32[2]{0}', space=sflag, size = 0x8, scoped, tag = 'scoped memory for tpu_custom_call.1']
    #allocation14 [shape = 'u8[4096]{0}', space=vmem, size = 0x1000, scoped, tag = 'output window, operand 2']
    %14 = vsyncpa [#allocation3], 0
    %s15 = scalar_lea.sflag [#allocation3], 1
    %16 = vsyncpa %s15, 0
    %17 = vsyncpa [#allocation6], 0
    %s18 = scalar_lea.sflag [#allocation6], 1
    %19 = vsyncpa %s18, 0
    %20 = vsyncpa [#allocation9], 0
    %21 = vsyncpa [#allocation4], 0
    %s22 = scalar_lea.sflag [#allocation4], 1
    %23 = vsyncpa %s22, 0
    %24 = vsyncpa [#allocation13], 0
    %s25 = scalar_lea.sflag [#allocation13], 1
    %26 = vsyncpa %s25, 0
    loop: start=0, step=1, limit=4
    $region2: #{tpu_custom_call.1} parent=1 // loop_pre_header
      _
    $region3: #{tpu_custom_call.1} parent=1 // loop_header
      %s28 = sphi 0, %s32
      %p29 = scmp.ge.s32.totalorder %s28, 4
      %s35 = sphi 0, %s47
      %s36 = sphi 0, %s43
      %s37 = sphi 0, %s35
      %s38 = sphi 0, %s36
      %s39 = sphi 0, %s37
      %s40 = sphi 0, %s38
      %s52 = sphi 0, %s54
      %s55 = sphi 0, %s52
      %s56 = sphi 0, %s55
      %s72 = sphi 0, %s56
      %s80 = sphi 0, %s82
      %s83 = sphi 0, %s80
      %s84 = sphi 0, %s83
      %s100 = sphi 0, %s84
      %s108 = sphi 0, %s110
      %s111 = sphi 0, %s108
      %s112 = sphi 0, %s111
      %s128 = sphi 0, %s112
      %s132 = sphi 0, %s132
      %s134 = sphi 0, %s132
      %s135 = sphi 0, %s134
      %s149 = sphi 0, %s135
      %s153 = sphi 0, %s153
      %s155 = sphi 0, %s153
      %s156 = sphi 0, %s155
      %s170 = sphi 0, %s156
      %s174 = sphi 0, %s174
      %s176 = sphi 0, %s174
      %s177 = sphi 0, %s176
      %s191 = sphi 0, %s177
      %s199 = sphi 0, %s201
      %s202 = sphi 0, %s199
      %s203 = sphi 0, %s202
      %s219 = sphi 0, %s203
      %s227 = sphi 0, %s229
      %s230 = sphi 0, %s227
      %s231 = sphi 0, %s230
      %s247 = sphi 0, %s231
      %s255 = sphi 0, %s257
      %s258 = sphi 0, %s255
      %s259 = sphi 0, %s258
      %s275 = sphi 0, %s259
    $region4: #{tpu_custom_call.1} parent=1 // loop_header_branch
      %31 = sbr.rel (%p29) target = $region8
    $region5: #{tpu_custom_call.1} parent=1 // loop_body
      %s33 = ssub.s32 %s28, 1
      %s34 = ssub.s32 %s28, 2
      %s41 = sadd.s32 1, %s36
      %p42 = scmp.ge.s32.totalorder %s41, 1
      %s43 = scalar_select %p42, 0, %s41
      %s44 = sadd.s32 1, %s35
      %s45 = scalar_select %p42, %s44, %s35
      %p46 = scmp.ge.s32.totalorder %s45, 2
      %s47 = scalar_select %p46, 0, %s45
      %s48 = ssub.s32 %s35, %s47
      %s49 = ssub.s32 %s36, %s43
      %s50 = sor.u32 %s48, %s49
      %p51 = scmp.eq.s32.totalorder %s50, 0
      %s53 = sadd.s32 %s52, 1
      %s54 = scalar_select %p51, %s52, %s53
      %p57 = pneg %p51
      %p58 = scmp.eq.s32.totalorder %s28, 1
      %p59 = por %p57, %p58
      %p60 = scmp.ne.s32.totalorder %s52, %s55
      %p61 = scmp.eq.s32.totalorder %s28, 0
      %p62 = por %p60, %p61
      %p63 = scmp.ne.s32.totalorder %s52, %s55
      %p64 = scmp.eq.s32.totalorder %s33, 1
      %p65 = por %p63, %p64
      %p66 = scmp.ne.s32.totalorder %s55, %s56
      %p67 = scmp.eq.s32.totalorder %s33, 0
      %p68 = por %p66, %p67
      %p69 = scmp.ne.s32.totalorder %s55, %s56
      %p70 = scmp.eq.s32.totalorder %s34, 1
      %p71 = por %p69, %p70
      %p73 = scmp.ne.s32.totalorder %s56, %s72
      %p74 = scmp.eq.s32.totalorder %s34, 0
      %p75 = por %p73, %p74
      %s76 = ssub.s32 %s35, %s47
      %s77 = ssub.s32 %s36, %s43
      %s78 = sor.u32 %s76, %s77
      %p79 = scmp.eq.s32.totalorder %s78, 0
      %s81 = sadd.s32 %s80, 1
      %s82 = scalar_select %p79, %s80, %s81
      %p85 = pneg %p79
      %p86 = scmp.eq.s32.totalorder %s28, 1
      %p87 = por %p85, %p86
      %p88 = scmp.ne.s32.totalorder %s80, %s83
      %p89 = scmp.eq.s32.totalorder %s28, 0
      %p90 = por %p88, %p89
      %p91 = scmp.ne.s32.totalorder %s80, %s83
      %p92 = scmp.eq.s32.totalorder %s33, 1
      %p93 = por %p91, %p92
      %p94 = scmp.ne.s32.totalorder %s83, %s84
      %p95 = scmp.eq.s32.totalorder %s33, 0
      %p96 = por %p94, %p95
      %p97 = scmp.ne.s32.totalorder %s83, %s84
      %p98 = scmp.eq.s32.totalorder %s34, 1
      %p99 = por %p97, %p98
      %p101 = scmp.ne.s32.totalorder %s84, %s100
      %p102 = scmp.eq.s32.totalorder %s34, 0
      %p103 = por %p101, %p102
      %s104 = ssub.s32 %s35, %s47
      %s105 = ssub.s32 %s36, %s43
      %s106 = sor.u32 %s104, %s105
      %p107 = scmp.eq.s32.totalorder %s106, 0
      %s109 = sadd.s32 %s108, 1
      %s110 = scalar_select %p107, %s108, %s109
      %p113 = pneg %p107
      %p114 = scmp.eq.s32.totalorder %s28, 1
      %p115 = por %p113, %p114
      %p116 = scmp.ne.s32.totalorder %s108, %s111
      %p117 = scmp.eq.s32.totalorder %s28, 0
      %p118 = por %p116, %p117
      %p119 = scmp.ne.s32.totalorder %s108, %s111
      %p120 = scmp.eq.s32.totalorder %s33, 1
      %p121 = por %p119, %p120
      %p122 = scmp.ne.s32.totalorder %s111, %s112
      %p123 = scmp.eq.s32.totalorder %s33, 0
      %p124 = por %p122, %p123
      %p125 = scmp.ne.s32.totalorder %s111, %s112
      %p126 = scmp.eq.s32.totalorder %s34, 1
      %p127 = por %p125, %p126
      %p129 = scmp.ne.s32.totalorder %s112, %s128
      %p130 = scmp.eq.s32.totalorder %s34, 0
      %p131 = por %p129, %p130
      %s133 = sadd.s32 %s132, 1
      %p136 = scmp.eq.s32.totalorder %s28, 1
      %p137 = scmp.ne.s32.totalorder %s132, %s134
      %p138 = scmp.eq.s32.totalorder %s28, 0
      %p139 = por %p137, %p138
      %p140 = scmp.ne.s32.totalorder %s132, %s134
      %p141 = scmp.eq.s32.totalorder %s33, 1
      %p142 = por %p140, %p141
      %p143 = scmp.ne.s32.totalorder %s134, %s135
      %p144 = scmp.eq.s32.totalorder %s33, 0
      %p145 = por %p143, %p144
      %p146 = scmp.ne.s32.totalorder %s134, %s135
      %p147 = scmp.eq.s32.totalorder %s34, 1
      %p148 = por %p146, %p147
      %p150 = scmp.ne.s32.totalorder %s135, %s149
      %p151 = scmp.eq.s32.totalorder %s34, 0
      %p152 = por %p150, %p151
      %s154 = sadd.s32 %s153, 1
      %p157 = scmp.eq.s32.totalorder %s28, 1
      %p158 = scmp.ne.s32.totalorder %s153, %s155
      %p159 = scmp.eq.s32.totalorder %s28, 0
      %p160 = por %p158, %p159
      %p161 = scmp.ne.s32.totalorder %s153, %s155
      %p162 = scmp.eq.s32.totalorder %s33, 1
      %p163 = por %p161, %p162
      %p164 = scmp.ne.s32.totalorder %s155, %s156
      %p165 = scmp.eq.s32.totalorder %s33, 0
      %p166 = por %p164, %p165
      %p167 = scmp.ne.s32.totalorder %s155, %s156
      %p168 = scmp.eq.s32.totalorder %s34, 1
      %p169 = por %p167, %p168
      %p171 = scmp.ne.s32.totalorder %s156, %s170
      %p172 = scmp.eq.s32.totalorder %s34, 0
      %p173 = por %p171, %p172
      %s175 = sadd.s32 %s174, 1
      %p178 = scmp.eq.s32.totalorder %s28, 1
      %p179 = scmp.ne.s32.totalorder %s174, %s176
      %p180 = scmp.eq.s32.totalorder %s28, 0
      %p181 = por %p179, %p180
      %p182 = scmp.ne.s32.totalorder %s174, %s176
      %p183 = scmp.eq.s32.totalorder %s33, 1
      %p184 = por %p182, %p183
      %p185 = scmp.ne.s32.totalorder %s176, %s177
      %p186 = scmp.eq.s32.totalorder %s33, 0
      %p187 = por %p185, %p186
      %p188 = scmp.ne.s32.totalorder %s176, %s177
      %p189 = scmp.eq.s32.totalorder %s34, 1
      %p190 = por %p188, %p189
      %p192 = scmp.ne.s32.totalorder %s177, %s191
      %p193 = scmp.eq.s32.totalorder %s34, 0
      %p194 = por %p192, %p193
      %s195 = ssub.s32 %s35, %s47
      %s196 = ssub.s32 %s36, %s43
      %s197 = sor.u32 %s195, %s196
      %p198 = scmp.eq.s32.totalorder %s197, 0
      %s200 = sadd.s32 %s199, 1
      %s201 = scalar_select %p198, %s199, %s200
      %p204 = pneg %p198
      %p205 = scmp.eq.s32.totalorder %s28, 1
      %p206 = por %p204, %p205
      %p207 = scmp.ne.s32.totalorder %s199, %s202
      %p208 = scmp.eq.s32.totalorder %s28, 0
      %p209 = por %p207, %p208
      %p210 = scmp.ne.s32.totalorder %s199, %s202
      %p211 = scmp.eq.s32.totalorder %s33, 1
      %p212 = por %p210, %p211
      %p213 = scmp.ne.s32.totalorder %s202, %s203
      %p214 = scmp.eq.s32.totalorder %s33, 0
      %p215 = por %p213, %p214
      %p216 = scmp.ne.s32.totalorder %s202, %s203
      %p217 = scmp.eq.s32.totalorder %s34, 1
      %p218 = por %p216, %p217
      %p220 = scmp.ne.s32.totalorder %s203, %s219
      %p221 = scmp.eq.s32.totalorder %s34, 0
      %p222 = por %p220, %p221
      %s223 = ssub.s32 %s35, %s47
      %s224 = ssub.s32 %s36, %s43
      %s225 = sor.u32 %s223, %s224
      %p226 = scmp.eq.s32.totalorder %s225, 0
      %s228 = sadd.s32 %s227, 1
      %s229 = scalar_select %p226, %s227, %s228
      %p232 = pneg %p226
      %p233 = scmp.eq.s32.totalorder %s28, 1
      %p234 = por %p232, %p233
      %p235 = scmp.ne.s32.totalorder %s227, %s230
      %p236 = scmp.eq.s32.totalorder %s28, 0
      %p237 = por %p235, %p236
      %p238 = scmp.ne.s32.totalorder %s227, %s230
      %p239 = scmp.eq.s32.totalorder %s33, 1
      %p240 = por %p238, %p239
      %p241 = scmp.ne.s32.totalorder %s230, %s231
      %p242 = scmp.eq.s32.totalorder %s33, 0
      %p243 = por %p241, %p242
      %p244 = scmp.ne.s32.totalorder %s230, %s231
      %p245 = scmp.eq.s32.totalorder %s34, 1
      %p246 = por %p244, %p245
      %p248 = scmp.ne.s32.totalorder %s231, %s247
      %p249 = scmp.eq.s32.totalorder %s34, 0
      %p250 = por %p248, %p249
      %s251 = ssub.s32 %s35, %s47
      %s252 = ssub.s32 %s36, %s43
      %s253 = sor.u32 %s251, %s252
      %p254 = scmp.eq.s32.totalorder %s253, 0
      %s256 = sadd.s32 %s255, 1
      %s257 = scalar_select %p254, %s255, %s256
      %p260 = pneg %p254
      %p261 = scmp.eq.s32.totalorder %s28, 1
      %p262 = por %p260, %p261
      %p263 = scmp.ne.s32.totalorder %s255, %s258
      %p264 = scmp.eq.s32.totalorder %s28, 0
      %p265 = por %p263, %p264
      %p266 = scmp.ne.s32.totalorder %s255, %s258
      %p267 = scmp.eq.s32.totalorder %s33, 1
      %p268 = por %p266, %p267
      %p269 = scmp.ne.s32.totalorder %s258, %s259
      %p270 = scmp.eq.s32.totalorder %s33, 0
      %p271 = por %p269, %p270
      %p272 = scmp.ne.s32.totalorder %s258, %s259
      %p273 = scmp.eq.s32.totalorder %s34, 1
      %p274 = por %p272, %p273
      %p276 = scmp.ne.s32.totalorder %s259, %s275
      %p277 = scmp.eq.s32.totalorder %s34, 0
      %p278 = por %p276, %p277
      %p279 = scmp.le.s32.totalorder 1, %s28
      %p280 = scmp.lt.s32.totalorder %s28, 3
      %p281 = pnand %p279, %p280
      %p282 = pneg %p281
      // Predicated region
      $region9: #{tpu_custom_call.1} parent=5 // pred_check
        _
      $region10: #{tpu_custom_call.1} parent=5 // pred_check_branch
        %284 = sbr.rel (%p281) target = $region12
      $region11: #{tpu_custom_call.1} parent=5 // pred_region
        %s285 = ssub.s32 %s28, 1
        // Predicated region
        $region13: #{tpu_custom_call.1} parent=11 // pred_check
          %p286 = pneg %p145
        $region14: #{tpu_custom_call.1} parent=11 // pred_check_branch
          %288 = sbr.rel (%p286) target = $region16
        $region15: #{tpu_custom_call.1} parent=11 // pred_region
          %s290 = ssub.s32 256, 256
          %291 = vsyncadd [#allocation9], %s290
          %s292 = sshll.u32 [#allocation8], 4
          %s293 = int_to_ptr.vmem [resolvable:$true] %s292
          %298 = dma.hbm_to_vmem [thread:$0]  %s3, 256, %s293, [#allocation9], 64, 64, 4
        $region16: #{tpu_custom_call.1} parent=11 // pred_fallthru
          _
        // Predicated region
        $region17: #{tpu_custom_call.1} parent=11 // pred_check
          %p299 = pneg %p166
        $region18: #{tpu_custom_call.1} parent=11 // pred_check_branch
          %301 = sbr.rel (%p299) target = $region20
        $region19: #{tpu_custom_call.1} parent=11 // pred_region
          %s303 = ssub.s32 256, 256
          %304 = vsyncadd [#allocation9], %s303
          %s305 = sshll.u32 [#allocation10], 4
          %s306 = int_to_ptr.vmem [resolvable:$true] %s305
          %311 = dma.hbm_to_vmem [thread:$0]  %s4, 256, %s306, [#allocation9], 64, 64, 4
        $region20: #{tpu_custom_call.1} parent=11 // pred_fallthru
          _
        // Predicated region
        $region21: #{tpu_custom_call.1} parent=11 // pred_check
          %p312 = pneg %p187
        $region22: #{tpu_custom_call.1} parent=11 // pred_check_branch
          %314 = sbr.rel (%p312) target = $region24
        $region23: #{tpu_custom_call.1} parent=11 // pred_region
          _
        $region24: #{tpu_custom_call.1} parent=11 // pred_fallthru
          _
      $region12: #{tpu_custom_call.1} parent=5 // pred_fallthru
        _
      %p315 = scmp.lt.s32.totalorder %s28, 2
      // Predicated region
      $region25: #{tpu_custom_call.1} parent=5 // pred_check
        %p316 = pneg %p315
      $region26: #{tpu_custom_call.1} parent=5 // pred_check_branch
        %318 = sbr.rel (%p316) target = $region28
      $region27: #{tpu_custom_call.1} parent=5 // pred_region
        // Predicated region
        $region29: #{tpu_custom_call.1} parent=27 // pred_check
          %p319 = pneg %p62
        $region30: #{tpu_custom_call.1} parent=27 // pred_check_branch
          %321 = sbr.rel (%p319) target = $region32
        $region31: #{tpu_custom_call.1} parent=27 // pred_region
          %s322 = sand.u32 %s52, 1
          %s323 = scalar_lea.sflag [#allocation3], %s322
          %s324 = sand.u32 %s52, 1
          %s325 = smul.addr %s324, 8
          %s326 = scalar_lea.vmem [#allocation2], %s325
          %s328 = ssub.s32 128, 128
          %329 = vsyncadd %s323, %s328
          %s330 = sadd.s32 %s36, %s35
          %s331 = smul.addr %s330, 128
          %s332 = scalar_lea.hbm %s0, %s331
          %s334 = sshll.u32 %s326, 4
          %s335 = int_to_ptr.vmem [resolvable:$true] %s334
          %337 = dma.hbm_to_vmem [thread:$0]  %s332, 128, %s335, %s323
        $region32: #{tpu_custom_call.1} parent=27 // pred_fallthru
          _
        // Predicated region
        $region33: #{tpu_custom_call.1} parent=27 // pred_check
          %p338 = pneg %p90
        $region34: #{tpu_custom_call.1} parent=27 // pred_check_branch
          %340 = sbr.rel (%p338) target = $region36
        $region35: #{tpu_custom_call.1} parent=27 // pred_region
          %s341 = sand.u32 %s28, 1
          %s342 = scalar_lea.sflag [#allocation6], %s341
          %s343 = sand.u32 %s80, 1
          %s344 = smul.addr %s343, 8
          %s345 = scalar_lea.vmem [#allocation5], %s344
          %s347 = ssub.s32 128, 128
          %348 = vsyncadd %s342, %s347
          %s349 = sadd.s32 %s36, %s35
          %s350 = smul.addr %s349, 128
          %s351 = scalar_lea.hbm %s1, %s350
          %s353 = sshll.u32 %s345, 4
          %s354 = int_to_ptr.vmem [resolvable:$true] %s353
          %356 = dma.hbm_to_vmem [thread:$0]  %s351, 128, %s354, %s342
        $region36: #{tpu_custom_call.1} parent=27 // pred_fallthru
          _
        // Predicated region
        $region37: #{tpu_custom_call.1} parent=27 // pred_check
          %p357 = pneg %p118
        $region38: #{tpu_custom_call.1} parent=27 // pred_check_branch
          %359 = sbr.rel (%p357) target = $region40
        $region39: #{tpu_custom_call.1} parent=27 // pred_region
          %s360 = sand.u32 %s28, 1
          %s361 = scalar_lea.sflag [#allocation6], %s360
          %s362 = sand.u32 %s108, 1
          %s363 = smul.addr %s362, 8
          %s364 = scalar_lea.vmem [#allocation7], %s363
          %s366 = ssub.s32 128, 128
          %367 = vsyncadd %s361, %s366
          %s368 = sadd.s32 %s36, %s35
          %s369 = smul.addr %s368, 128
          %s370 = scalar_lea.hbm %s2, %s369
          %s372 = sshll.u32 %s364, 4
          %s373 = int_to_ptr.vmem [resolvable:$true] %s372
          %375 = dma.hbm_to_vmem [thread:$0]  %s370, 128, %s373, %s361
        $region40: #{tpu_custom_call.1} parent=27 // pred_fallthru
          _
      $region28: #{tpu_custom_call.1} parent=5 // pred_fallthru
        _
      %p376 = scmp.le.s32.totalorder 1, %s28
      %p377 = scmp.lt.s32.totalorder %s28, 3
      %p378 = pnand %p376, %p377
      %p379 = pneg %p378
      // Predicated region
      $region41: #{tpu_custom_call.1} parent=5 // pred_check
        _
      $region42: #{tpu_custom_call.1} parent=5 // pred_check_branch
        %381 = sbr.rel (%p378) target = $region44
      $region43: #{tpu_custom_call.1} parent=5 // pred_region
        %s382 = ssub.s32 %s28, 1
        %s383 = sand.u32 %s55, 1
        %s384 = scalar_lea.sflag [#allocation3], %s383
        %s385 = sand.u32 %s55, 1
        %s386 = smul.addr %s385, 8
        %s387 = scalar_lea.vmem [#allocation2], %s386
        // Predicated region
        $region45: #{tpu_custom_call.1} parent=43 // pred_check
          %p388 = pneg %p68
        $region46: #{tpu_custom_call.1} parent=43 // pred_check_branch
          %390 = sbr.rel (%p388) target = $region48
        $region47: #{tpu_custom_call.1} parent=43 // pred_region
          %391 = dma.done %s384, 128
        $region48: #{tpu_custom_call.1} parent=43 // pred_fallthru
          _
        %s392 = sand.u32 %s33, 1
        %s393 = scalar_lea.sflag [#allocation6], %s392
        %s394 = sand.u32 %s83, 1
        %s395 = smul.addr %s394, 8
        %s396 = scalar_lea.vmem [#allocation5], %s395
        // Predicated region
        $region49: #{tpu_custom_call.1} parent=43 // pred_check
          %p397 = pneg %p96
        $region50: #{tpu_custom_call.1} parent=43 // pred_check_branch
          %399 = sbr.rel (%p397) target = $region52
        $region51: #{tpu_custom_call.1} parent=43 // pred_region
          %400 = dma.done %s393, 128
        $region52: #{tpu_custom_call.1} parent=43 // pred_fallthru
          _
        %s401 = sand.u32 %s33, 1
        %s402 = scalar_lea.sflag [#allocation6], %s401
        %s403 = sand.u32 %s111, 1
        %s404 = smul.addr %s403, 8
        %s405 = scalar_lea.vmem [#allocation7], %s404
        // Predicated region
        $region53: #{tpu_custom_call.1} parent=43 // pred_check
          %p406 = pneg %p124
        $region54: #{tpu_custom_call.1} parent=43 // pred_check_branch
          %408 = sbr.rel (%p406) target = $region56
        $region55: #{tpu_custom_call.1} parent=43 // pred_region
          %409 = dma.done %s402, 128
        $region56: #{tpu_custom_call.1} parent=43 // pred_fallthru
          _
        // Predicated region
        $region57: #{tpu_custom_call.1} parent=43 // pred_check
          %p410 = pneg %p145
        $region58: #{tpu_custom_call.1} parent=43 // pred_check_branch
          %412 = sbr.rel (%p410) target = $region60
        $region59: #{tpu_custom_call.1} parent=43 // pred_region
          %413 = dma.done [#allocation9], 256
        $region60: #{tpu_custom_call.1} parent=43 // pred_fallthru
          _
        // Predicated region
        $region61: #{tpu_custom_call.1} parent=43 // pred_check
          %p414 = pneg %p166
        $region62: #{tpu_custom_call.1} parent=43 // pred_check_branch
          %416 = sbr.rel (%p414) target = $region64
        $region63: #{tpu_custom_call.1} parent=43 // pred_region
          %417 = dma.done [#allocation9], 256
        $region64: #{tpu_custom_call.1} parent=43 // pred_fallthru
          _
        %s418 = sand.u32 %s55, 1
        %s419 = scalar_lea.sflag [#allocation3], %s418
        %s420 = sand.u32 %s55, 1
        %s421 = smul.addr %s420, 8
        %s422 = scalar_lea.vmem [#allocation2], %s421
        %p423 = pneg %p68
        %p424 = pneg %p65
        %s425 = sand.u32 %s33, 1
        %s426 = scalar_lea.sflag [#allocation6], %s425
        %s427 = sand.u32 %s83, 1
        %s428 = smul.addr %s427, 8
        %s429 = scalar_lea.vmem [#allocation5], %s428
        %p430 = pneg %p96
        %p431 = pneg %p93
        %s432 = sand.u32 %s33, 1
        %s433 = scalar_lea.sflag [#allocation6], %s432
        %s434 = sand.u32 %s111, 1
        %s435 = smul.addr %s434, 8
        %s436 = scalar_lea.vmem [#allocation7], %s435
        %p437 = pneg %p124
        %p438 = pneg %p121
        %p439 = pneg %p145
        %p440 = pneg %p142
        %p441 = pneg %p166
        %p442 = pneg %p163
        %p443 = pneg %p187
        %p444 = pneg %p184
        %p445 = pneg %p215
        %p446 = pneg %p212
        %s447 = sand.u32 %s202, 1
        %s448 = scalar_lea.sflag [#allocation4], %s447
        %s449 = sand.u32 %s202, 1
        %s450 = smul.addr %s449, 4
        %s451 = scalar_lea.vmem [#allocation11], %s450
        %p452 = pneg %p243
        %p453 = pneg %p240
        %s454 = sand.u32 %s33, 1
        %s455 = scalar_lea.sflag [#allocation13], %s454
        %s456 = sand.u32 %s230, 1
        %s457 = smul.addr %s456, 4
        %s458 = scalar_lea.vmem [#allocation12], %s457
        %p459 = pneg %p271
        %p460 = pneg %p268
        %s461 = sand.u32 %s33, 1
        %s462 = scalar_lea.sflag [#allocation13], %s461
        %s463 = sand.u32 %s258, 1
        %s464 = smul.addr %s463, 4
        %s465 = scalar_lea.vmem [#allocation14], %s464
        %v467 = vld [vmem:[%s387] sm:$0xff]
        %v468 = vpack.c.bf16 %v467, %v467
        %v469 = vld [vmem:[%s396] sm:$0xff]
        %v470 = vpack.c.bf16 %v469, %v469
        %v471 = vld [vmem:[%s405] sm:$0xff]
        %v472 = vpack.c.bf16 %v471, %v471
        %v473 = vld [vmem:[#allocation8] sm:$0xf]
        %v474 = vld [vmem:[#allocation8 + $0x4] sm:$0xf]
        %v475 = vld [vmem:[#allocation8 + $0x8] sm:$0xf]
        %v476 = vld [vmem:[#allocation8 + $0xc] sm:$0xf]
        %v481 = vunpack.c.l.b16 %v473
        %v482 = vunpack.c.l.b16 %v474
        %v483 = vunpack.c.l.b16 %v475
        %v484 = vunpack.c.l.b16 %v476
        %v485 = vpack.c.b16 %v482, %v481
        %v486 = vpack.c.b16 %v484, %v483
        %vm489 = vcmask 261120
        %v491 = vsel %vm489, %v468, 0
        %493 = vmatprep.subr.bf16.mxu0 0
        %494 = vmatpush1.bf16.msra.mxu0 %v485
        %495 = vmatprep.subr.bf16.mxu0 0
        %496 = vmatpush1.bf16.msra.mxu0 %v486
        %497 = vmatprep.subr.bf16.mxu0 0
        %498 = vmatpush1.bf16.msra.mxu0 0
        %499 = vmatprep.subr.bf16.mxu0 0
        %500 = vmatpush1.bf16.msra.mxu0 0
        %501 = vmatprep.subr.bf16.mxu0 0
        %502 = vmatpush1.bf16.msra.mxu0 0
        %503 = vmatprep.subr.bf16.mxu0 0
        %504 = vmatpush1.bf16.msra.mxu0 0
        %505 = vmatprep.subr.bf16.mxu0 0
        %506 = vmatpush1.bf16.msra.mxu0 0
        %507 = vmatprep.subr.bf16.mxu0 0
        %508 = vmatpush1.bf16.msra.mxu0 0
        %509 = vmatprep.subr.bf16.mxu0 0
        %510 = vmatpush1.bf16.msra.mxu0 0
        %511 = vmatprep.subr.bf16.mxu0 0
        %512 = vmatpush1.bf16.msra.mxu0 0
        %513 = vmatprep.subr.bf16.mxu0 0
        %514 = vmatpush1.bf16.msra.mxu0 0
        %515 = vmatprep.subr.bf16.mxu0 0
        %516 = vmatpush1.bf16.msra.mxu0 0
        %517 = vmatprep.subr.bf16.mxu0 0
        %518 = vmatpush1.bf16.msra.mxu0 0
        %519 = vmatprep.subr.bf16.mxu0 0
        %520 = vmatpush1.bf16.msra.mxu0 0
        %521 = vmatprep.subr.bf16.mxu0 0
        %522 = vmatpush1.bf16.msra.mxu0 0
        %523 = vmatprep.subr.bf16.mxu0 0
        %524 = vmatpush1.bf16.msra.mxu0 0
        %525 = vmatprep.mubr.bf16.mxu0 0
        %526 = vmatmul.mubr.bf16.gmra.mrb[0].mxu0 %v491
        %v527 = vpop.f32.mrb[0].mxu0
        %v528 = vadd.f32 0.0, %v527
        %v529 = vpop.f32.mrb[0].mxu0
        %v530 = vpop.f32.mrb[0].mxu0
        %v531 = vpop.f32.mrb[0].mxu0
        %532 = vdwg.mxu0
        %v533 = vpack.c.bf16 %v528, %v528
        %vm534 = vcmask 257024
        %535 = vst.msk [vmem:[%s451] sm:$0xf] %vm534, %v533
        %v536 = vld [vmem:[#allocation10] sm:$0xf]
        %v537 = vld [vmem:[#allocation10 + $0x4] sm:$0xf]
        %v538 = vld [vmem:[#allocation10 + $0x8] sm:$0xf]
        %v539 = vld [vmem:[#allocation10 + $0xc] sm:$0xf]
        %v544 = vunpack.c.l.b16 %v536
        %v545 = vunpack.c.l.b16 %v537
        %v546 = vunpack.c.l.b16 %v538
        %v547 = vunpack.c.l.b16 %v539
        %v548 = vpack.c.b16 %v545, %v544
        %v549 = vpack.c.b16 %v547, %v546
        %v553 = vsel %vm489, %v470, 0
        %555 = vmatprep.subr.bf16.mxu0 0
        %556 = vmatpush1.bf16.msra.mxu0 %v548
        %557 = vmatprep.subr.bf16.mxu0 0
        %558 = vmatpush1.bf16.msra.mxu0 %v549
        %559 = vmatprep.subr.bf16.mxu0 0
        %560 = vmatpush1.bf16.msra.mxu0 0
        %561 = vmatprep.subr.bf16.mxu0 0
        %562 = vmatpush1.bf16.msra.mxu0 0
        %563 = vmatprep.subr.bf16.mxu0 0
        %564 = vmatpush1.bf16.msra.mxu0 0
        %565 = vmatprep.subr.bf16.mxu0 0
        %566 = vmatpush1.bf16.msra.mxu0 0
        %567 = vmatprep.subr.bf16.mxu0 0
        %568 = vmatpush1.bf16.msra.mxu0 0
        %569 = vmatprep.subr.bf16.mxu0 0
        %570 = vmatpush1.bf16.msra.mxu0 0
        %571 = vmatprep.subr.bf16.mxu0 0
        %572 = vmatpush1.bf16.msra.mxu0 0
        %573 = vmatprep.subr.bf16.mxu0 0
        %574 = vmatpush1.bf16.msra.mxu0 0
        %575 = vmatprep.subr.bf16.mxu0 0
        %576 = vmatpush1.bf16.msra.mxu0 0
        %577 = vmatprep.subr.bf16.mxu0 0
        %578 = vmatpush1.bf16.msra.mxu0 0
        %579 = vmatprep.subr.bf16.mxu0 0
        %580 = vmatpush1.bf16.msra.mxu0 0
        %581 = vmatprep.subr.bf16.mxu0 0
        %582 = vmatpush1.bf16.msra.mxu0 0
        %583 = vmatprep.subr.bf16.mxu0 0
        %584 = vmatpush1.bf16.msra.mxu0 0
        %585 = vmatprep.subr.bf16.mxu0 0
        %586 = vmatpush1.bf16.msra.mxu0 0
        %587 = vmatprep.mubr.bf16.mxu0 0
        %588 = vmatmul.mubr.bf16.gmra.mrb[0].mxu0 %v553
        %v589 = vpop.f32.mrb[0].mxu0
        %v590 = vadd.f32 0.0, %v589
        %v591 = vpop.f32.mrb[0].mxu0
        %v592 = vpop.f32.mrb[0].mxu0
        %v593 = vpop.f32.mrb[0].mxu0
        %594 = vdwg.mxu0
        %v595 = vpack.c.bf16 %v590, %v590
        %596 = vst.msk [vmem:[%s458] sm:$0xf] %vm534, %v595
        %v597 = vld [vmem:[%s5] sm:$0xf]
        %v598 = vld [vmem:[%s5 + $0x4] sm:$0xf]
        %v599 = vld [vmem:[%s5 + $0x8] sm:$0xf]
        %v600 = vld [vmem:[%s5 + $0xc] sm:$0xf]
        %v605 = vunpack.c.l.b16 %v597
        %v606 = vunpack.c.l.b16 %v598
        %v607 = vunpack.c.l.b16 %v599
        %v608 = vunpack.c.l.b16 %v600
        %v609 = vpack.c.b16 %v606, %v605
        %v610 = vpack.c.b16 %v608, %v607
        %v614 = vsel %vm489, %v472, 0
        %616 = vmatprep.subr.bf16.mxu0 0
        %617 = vmatpush1.bf16.msra.mxu0 %v609
        %618 = vmatprep.subr.bf16.mxu0 0
        %619 = vmatpush1.bf16.msra.mxu0 %v610
        %620 = vmatprep.subr.bf16.mxu0 0
        %621 = vmatpush1.bf16.msra.mxu0 0
        %622 = vmatprep.subr.bf16.mxu0 0
        %623 = vmatpush1.bf16.msra.mxu0 0
        %624 = vmatprep.subr.bf16.mxu0 0
        %625 = vmatpush1.bf16.msra.mxu0 0
        %626 = vmatprep.subr.bf16.mxu0 0
        %627 = vmatpush1.bf16.msra.mxu0 0
        %628 = vmatprep.subr.bf16.mxu0 0
        %629 = vmatpush1.bf16.msra.mxu0 0
        %630 = vmatprep.subr.bf16.mxu0 0
        %631 = vmatpush1.bf16.msra.mxu0 0
        %632 = vmatprep.subr.bf16.mxu0 0
        %633 = vmatpush1.bf16.msra.mxu0 0
        %634 = vmatprep.subr.bf16.mxu0 0
        %635 = vmatpush1.bf16.msra.mxu0 0
        %636 = vmatprep.subr.bf16.mxu0 0
        %637 = vmatpush1.bf16.msra.mxu0 0
        %638 = vmatprep.subr.bf16.mxu0 0
        %639 = vmatpush1.bf16.msra.mxu0 0
        %640 = vmatprep.subr.bf16.mxu0 0
        %641 = vmatpush1.bf16.msra.mxu0 0
        %642 = vmatprep.subr.bf16.mxu0 0
        %643 = vmatpush1.bf16.msra.mxu0 0
        %644 = vmatprep.subr.bf16.mxu0 0
        %645 = vmatpush1.bf16.msra.mxu0 0
        %646 = vmatprep.subr.bf16.mxu0 0
        %647 = vmatpush1.bf16.msra.mxu0 0
        %648 = vmatprep.mubr.bf16.mxu0 0
        %649 = vmatmul.mubr.bf16.gmra.mrb[0].mxu0 %v614
        %v650 = vpop.f32.mrb[0].mxu0
        %v651 = vadd.f32 0.0, %v650
        %v652 = vpop.f32.mrb[0].mxu0
        %v653 = vpop.f32.mrb[0].mxu0
        %v654 = vpop.f32.mrb[0].mxu0
        %655 = vdwg.mxu0
        %v656 = vpack.c.bf16 %v651, %v651
        %657 = vst.msk [vmem:[%s465] sm:$0xf] %vm534, %v656
        %s658 = sand.u32 %s202, 1
        %s659 = scalar_lea.sflag [#allocation4], %s658
        %s660 = sand.u32 %s202, 1
        %s661 = smul.addr %s660, 4
        %s662 = scalar_lea.vmem [#allocation11], %s661
        %s663 = sand.u32 %s33, 1
        %s664 = scalar_lea.sflag [#allocation13], %s663
        %s665 = sand.u32 %s230, 1
        %s666 = smul.addr %s665, 4
        %s667 = scalar_lea.vmem [#allocation12], %s666
        %s668 = sand.u32 %s33, 1
        %s669 = scalar_lea.sflag [#allocation13], %s668
        %s670 = sand.u32 %s258, 1
        %s671 = smul.addr %s670, 4
        %s672 = scalar_lea.vmem [#allocation14], %s671
        // Predicated region
        $region65: #{tpu_custom_call.1} parent=43 // pred_check
          %p673 = pneg %p212
        $region66: #{tpu_custom_call.1} parent=43 // pred_check_branch
          %675 = sbr.rel (%p673) target = $region68
        $region67: #{tpu_custom_call.1} parent=43 // pred_region
          %s677 = ssub.s32 64, 64
          %678 = vsyncadd %s659, %s677
          %s679 = sadd.s32 %s38, %s37
          %s680 = smul.addr %s679, 64
          %s681 = scalar_lea.hbm %s6, %s680
          %s683 = sshll.u32 %s662, 4
          %s684 = int_to_ptr.vmem [resolvable:$true] %s683
          %686 = dma.vmem_to_hbm [thread:$0]  %s684, 64, %s681, %s659
        $region68: #{tpu_custom_call.1} parent=43 // pred_fallthru
          _
        // Predicated region
        $region69: #{tpu_custom_call.1} parent=43 // pred_check
          %p687 = pneg %p240
        $region70: #{tpu_custom_call.1} parent=43 // pred_check_branch
          %689 = sbr.rel (%p687) target = $region72
        $region71: #{tpu_custom_call.1} parent=43 // pred_region
          %s691 = ssub.s32 64, 64
          %692 = vsyncadd %s664, %s691
          %s693 = sadd.s32 %s38, %s37
          %s694 = smul.addr %s693, 64
          %s695 = scalar_lea.hbm %s7, %s694
          %s697 = sshll.u32 %s667, 4
          %s698 = int_to_ptr.vmem [resolvable:$true] %s697
          %700 = dma.vmem_to_hbm [thread:$0]  %s698, 64, %s695, %s664
        $region72: #{tpu_custom_call.1} parent=43 // pred_fallthru
          _
        // Predicated region
        $region73: #{tpu_custom_call.1} parent=43 // pred_check
          %p701 = pneg %p268
        $region74: #{tpu_custom_call.1} parent=43 // pred_check_branch
          %703 = sbr.rel (%p701) target = $region76
        $region75: #{tpu_custom_call.1} parent=43 // pred_region
          %s705 = ssub.s32 64, 64
          %706 = vsyncadd %s669, %s705
          %s707 = sadd.s32 %s38, %s37
          %s708 = smul.addr %s707, 64
          %s709 = scalar_lea.hbm %s8, %s708
          %s711 = sshll.u32 %s672, 4
          %s712 = int_to_ptr.vmem [resolvable:$true] %s711
          %714 = dma.vmem_to_hbm [thread:$0]  %s712, 64, %s709, %s669
        $region76: #{tpu_custom_call.1} parent=43 // pred_fallthru
          _
      $region44: #{tpu_custom_call.1} parent=5 // pred_fallthru
        _
      %p715 = scmp.le.s32.totalorder 2, %s28
      // Predicated region
      $region77: #{tpu_custom_call.1} parent=5 // pred_check
        %p716 = pneg %p715
      $region78: #{tpu_custom_call.1} parent=5 // pred_check_branch
        %718 = sbr.rel (%p716) target = $region80
      $region79: #{tpu_custom_call.1} parent=5 // pred_region
        %s719 = ssub.s32 %s28, 2
        // Predicated region
        $region81: #{tpu_custom_call.1} parent=79 // pred_check
          %p720 = pneg %p218
        $region82: #{tpu_custom_call.1} parent=79 // pred_check_branch
          %722 = sbr.rel (%p720) target = $region84
        $region83: #{tpu_custom_call.1} parent=79 // pred_region
          %s723 = sand.u32 %s203, 1
          %s724 = scalar_lea.sflag [#allocation4], %s723
          %s725 = sand.u32 %s203, 1
          %s726 = smul.addr %s725, 4
          %s727 = scalar_lea.vmem [#allocation11], %s726
          %728 = dma.done %s724, 64
        $region84: #{tpu_custom_call.1} parent=79 // pred_fallthru
          _
        // Predicated region
        $region85: #{tpu_custom_call.1} parent=79 // pred_check
          %p729 = pneg %p246
        $region86: #{tpu_custom_call.1} parent=79 // pred_check_branch
          %731 = sbr.rel (%p729) target = $region88
        $region87: #{tpu_custom_call.1} parent=79 // pred_region
          %s732 = sand.u32 %s34, 1
          %s733 = scalar_lea.sflag [#allocation13], %s732
          %s734 = sand.u32 %s231, 1
          %s735 = smul.addr %s734, 4
          %s736 = scalar_lea.vmem [#allocation12], %s735
          %737 = dma.done %s733, 64
        $region88: #{tpu_custom_call.1} parent=79 // pred_fallthru
          _
        // Predicated region
        $region89: #{tpu_custom_call.1} parent=79 // pred_check
          %p738 = pneg %p274
        $region90: #{tpu_custom_call.1} parent=79 // pred_check_branch
          %740 = sbr.rel (%p738) target = $region92
        $region91: #{tpu_custom_call.1} parent=79 // pred_region
          %s741 = sand.u32 %s34, 1
          %s742 = scalar_lea.sflag [#allocation13], %s741
          %s743 = sand.u32 %s259, 1
          %s744 = smul.addr %s743, 4
          %s745 = scalar_lea.vmem [#allocation14], %s744
          %746 = dma.done %s742, 64
        $region92: #{tpu_custom_call.1} parent=79 // pred_fallthru
          _
      $region80: #{tpu_custom_call.1} parent=5 // pred_fallthru
        _
    $region6: #{tpu_custom_call.1} parent=1 // loop_footer
      %s32 = sadd.s32 1, %s28
    $region7: #{tpu_custom_call.1} parent=1 // loop_footer_branch
      %27 = sbr.rel target = $region3
    $region8: #{tpu_custom_call.1} parent=1 // loop_exit
      _
    %747 = vsyncpa [#allocation3], 1
    %s748 = scalar_lea.sflag [#allocation3], 1
    %749 = vsyncpa %s748, 1
    %750 = vsyncpa [#allocation6], 1
    %s751 = scalar_lea.sflag [#allocation6], 1
    %752 = vsyncpa %s751, 1
    %753 = vsyncpa [#allocation9], 1
    %754 = vsyncpa [#allocation4], 1
    %s755 = scalar_lea.sflag [#allocation4], 1
    %756 = vsyncpa %s755, 1
    %757 = vsyncpa [#allocation13], 1
    %s758 = scalar_lea.sflag [#allocation13], 1
    %759 = vsyncpa %s758, 1

</llo_original>
